<compile_context>
chip_gen: v7x
topology: tpu7x:2x2x1
jax: 0.10.0
libtpu: 0.0.40
codegen_flags: <defaults>
</compile_context>

<pallas_src>
import jax
import jax.numpy as jnp
import numpy as np
from jax import lax
from jax.experimental import pallas as pl
from jax.experimental.pallas import tpu as pltpu

# ------------------------- configuration (args) ------------------------------
NB_GRAPHS = 2     # args.nb_graphs
NB_NODES = 64     # args.nb_nodes
FEAT_DIM = 32     # args.dims[i]  (same for every graph here)
HID_UNITS = 32    # args.hid_units

# dot_general dimension numbers: contract the LAST axis of both operands
# (A @ B^T).  Only used where B is an *activation* (cannot be pre-transposed).
_DN_TRANS_B = (((1,), (1,)), ((), ()))


# ----------------------------- Pallas kernel ---------------------------------
def dmgi_fused_kernel(x_ref, adj_ref, params_ref, bb_ref,
                      logits_ref, h1all_ref, loss_ref):
    """Fused DMGI forward (Mean branch, no attention, eval-mode dropout).

    x_ref      : (G*2N, G*F)  block-diagonal [feat_g; shuf_g] stacking
    adj_ref    : (G*2N, G*2N) blockdiag(adj_0, adj_0, ..., adj_{G-1}, adj_{G-1})
    params_ref : (G*F + D + N, D)  = [W_0^T; ...; W_{G-1}^T; W_bil^T; H]
    bb_ref     : (1, 1) bilinear bias (SMEM)
    logits_ref : (G, 2N)   h1all_ref: (N, D)   loss_ref: (1, 1)
    """
    G, twoN = logits_ref.shape
    N = twoN // 2
    D = params_ref.shape[1]
    GF = x_ref.shape[1]

    inv_n = jnp.float32(1.0 / N)
    inv_g = jnp.float32(1.0 / G)
    bias = bb_ref[0, 0]                       # scalar bilinear bias (SMEM read)

    # Parameter slab slices (static, sublane-tile aligned -> free).
    w_stack = params_ref[0:GF, :]             # (G*F, D)  stacked W_g^T
    w_bil_T = params_ref[GF:GF + D, :]        # (D, D)    W_bil^T
    Hm = params_ref[GF + D:GF + D + N, :]     # (N, D)    consensus H

    # --- 1) x @ W_g^T for every (graph, pos/neg) in ONE MXU push --------------
    xw = jnp.dot(x_ref[...], w_stack, preferred_element_type=jnp.float32)   # (G*2N, D)

    # --- 2) GCN propagate + ReLU for everything in ONE MXU push ---------------
    h_all = jnp.maximum(
        jnp.dot(adj_ref[...], xw, preferred_element_type=jnp.float32), 0.0)  # (G*2N, D)

    # --- 3) readout means for all graphs via one selector matmul --------------
    # sel[g, r] = 1/N  iff row r belongs to h_1 of graph g (rows g*2N .. g*2N+N-1)
    col = lax.broadcasted_iota(jnp.int32, (G, G * twoN), 1)
    row = lax.broadcasted_iota(jnp.int32, (G, G * twoN), 0)
    off = col - row * twoN
    sel = jnp.where((off >= 0) & (off < N), inv_n, jnp.float32(0.0))
    c_all = jax.nn.sigmoid(
        jnp.dot(sel, h_all, preferred_element_type=jnp.float32))             # (G, D)

    # --- 4) bilinear: V[g] = W_bil @ c_g  (weights pre-transposed) ------------
    V = jnp.dot(c_all, w_bil_T, preferred_element_type=jnp.float32)          # (G, D)

    # --- 5) scores for all graphs in one dot; lane-dense logits fall out ------
    sc = lax.dot_general(V, h_all, _DN_TRANS_B,
                         preferred_element_type=jnp.float32)                 # (G, G*2N)
    rows = [sc[g:g + 1, g * twoN:(g + 1) * twoN] for g in range(G)]
    logits_ref[...] = jnp.concatenate(rows, axis=0) + bias                   # one (G, 2N) store

    # --- epilogue: cross-graph means + consensus regularization loss ----------
    h1_m = h_all[0:N]
    h2_m = h_all[N:twoN]
    for g in range(1, G):                      # static, fully unrolled
        h1_m = h1_m + h_all[g * twoN:g * twoN + N]
        h2_m = h2_m + h_all[g * twoN + N:(g + 1) * twoN]
    h1_m = h1_m * inv_g
    h2_m = h2_m * inv_g

    h1all_ref[...] = h1_m
    d1 = Hm - h1_m
    d2 = Hm - h2_m
    loss_ref[...] = jnp.sum(d1 * d1 - d2 * d2).reshape(1, 1)


# ------------------------------ wrapper ---------------------------------------
def _block_diag(blocks):
    """Block-diagonal of same-dtype 2-D arrays (static shapes, jit-friendly)."""
    rows = sum(b.shape[0] for b in blocks)
    cols = sum(b.shape[1] for b in blocks)
    out = jnp.zeros((rows, cols), blocks[0].dtype)
    r = c = 0
    for b in blocks:
        out = out.at[r:r + b.shape[0], c:c + b.shape[1]].set(b)
        r += b.shape[0]
        c += b.shape[1]
    return out


@jax.jit
def dmgi_forward(features, shufs, adjs, gcn_weights, w_bil, b_bil, H):
    """features/shufs: (G, 1, N, F), adjs: (G, 1, N, N), gcn_weights: (G, D, F),
    w_bil: (D, D), b_bil: (1, 1), H: (1, N, D).  Returns the `result` dict."""
    G = features.shape[0]
    N = features.shape[2]
    F = features.shape[3]
    D = gcn_weights.shape[1]

    feat = features[:, 0]                                   # (G, N, F)
    shuf = shufs[:, 0]                                      # (G, N, F)
    adj = adjs[:, 0]                                        # (G, N, N)

    # Sublane-stack pos/neg per graph, then block-diagonalise across graphs so
    # a single matmul applies each graph's own GCN weight.
    x_g = jnp.concatenate([feat, shuf], axis=1)             # (G, 2N, F)
    x_blk = _block_diag([x_g[g] for g in range(G)])         # (G*2N, G*F)
    adj_blk = _block_diag([adj[g] for g in range(G) for _ in range(2)])  # (G*2N, G*2N)

    # Pre-transposed parameter slab -> one DMA, plain A@B in-kernel.
    w_stack = jnp.transpose(gcn_weights, (0, 2, 1)).reshape(G * F, D)    # [W_g^T]
    params = jnp.concatenate([w_stack, w_bil.T, H[0]], axis=0)           # (G*F+D+N, D)

    vmem = pl.BlockSpec(memory_space=pltpu.MemorySpace.VMEM)
    smem = pl.BlockSpec(memory_space=pltpu.MemorySpace.SMEM)

    logits, h1_all, reg = pl.pallas_call(
        dmgi_fused_kernel,
        out_shape=(
            jax.ShapeDtypeStruct((G, 2 * N), jnp.float32),   # lane-dense logits slab
            jax.ShapeDtypeStruct((N, D), jnp.float32),       # h_1_all (squeezed)
            jax.ShapeDtypeStruct((1, 1), jnp.float32),       # reg_loss
        ),
        in_specs=[vmem, vmem, vmem, smem],
        out_specs=(vmem, vmem, vmem),
    )(x_blk, adj_blk, params, b_bil)

    return {
        "logits": [logits[i:i + 1, :] for i in range(G)],    # list of (1, 2N)
        "h_1_all": h1_all[None, ...],                        # (1, N, D)
        "reg_loss": reg[0, 0],                               # scalar
    }


# --------------------------- pure-JAX reference --------------------------------
def _reference(features, shufs, adjs, gcn_weights, w_bil, b_bil, H):
    logits, h1_list, h2_list = [], [], []
    for i in range(features.shape[0]):
        x, s, a, w = features[i, 0], shufs[i, 0], adjs[i, 0], gcn_weights[i]
        h1 = jnp.maximum(a @ (x @ w.T), 0.0)
        h2 = jnp.maximum(a @ (s @ w.T), 0.0)
        c = jax.nn.sigmoid(jnp.mean(h1, axis=0))
        wc = w_bil @ c
        sc1 = h1 @ wc + b_bil[0, 0]
        sc2 = h2 @ wc + b_bil[0, 0]
        logits.append(jnp.concatenate([sc1, sc2])[None, :])
        h1_list.append(h1)
        h2_list.append(h2)
    m1 = jnp.mean(jnp.stack(h1_list), axis=0)[None]
    m2 = jnp.mean(jnp.stack(h2_list), axis=0)[None]
    reg = jnp.sum((H - m1) ** 2) - jnp.sum((H - m2) ** 2)
    return logits, m1, reg


# ----------------------------------- main --------------------------------------
if __name__ == "__main__":
    key = jax.random.PRNGKey(0)
    keys = jax.random.split(key, 8)

    G, N, F, D = NB_GRAPHS, NB_NODES, FEAT_DIM, HID_UNITS

    # Inputs: feature / shuf are (G, 1, N, F); adj is (G, 1, N, N) row-normalized.
    features = jax.random.normal(keys[0], (G, 1, N, F), jnp.float32)
    shufs = jax.random.normal(keys[1], (G, 1, N, F), jnp.float32)
    raw_adj = jax.random.uniform(keys[2], (G, 1, N, N), jnp.float32)
    adjs = raw_adj / jnp.sum(raw_adj, axis=-1, keepdims=True)

    # Parameters (deterministic, xavier-normal style).
    def xavier(k, shape, fan_in, fan_out):
        std = np.sqrt(2.0 / (fan_in + fan_out))
        return std * jax.random.normal(k, shape, jnp.float32)

    gcn_weights = xavier(keys[3], (G, D, F), F, D)        # nn.Linear(F, D).weight per graph
    w_bil = xavier(keys[4], (D, D), D, D)                 # nn.Bilinear(D, D, 1).weight[0]
    b_bil = jnp.zeros((1, 1), jnp.float32)                # bilinear bias
    H = xavier(keys[5], (1, N, D), N, D)                  # self.H  (Mean -> hid_units)

    result = dmgi_forward(features, shufs, adjs, gcn_weights, w_bil, b_bil, H)
    result = jax.block_until_ready(result)

    # Verify against a pure-JAX reference.
    ref_logits, ref_h1_all, ref_reg = _reference(
        features, shufs, adjs, gcn_weights, w_bil, b_bil, H)
    for got, want in zip(result["logits"], ref_logits):
        np.testing.assert_allclose(np.asarray(got), np.asarray(want),
                                   rtol=1e-4, atol=1e-4)
    np.testing.assert_allclose(np.asarray(result["h_1_all"]),
                               np.asarray(ref_h1_all), rtol=1e-4, atol=1e-4)
    np.testing.assert_allclose(np.asarray(result["reg_loss"]),
                               np.asarray(ref_reg), rtol=1e-3, atol=1e-3)

    print("KERNEL_OK")
</pallas_src>

<mosaic_0001>
module attributes {stable_mosaic.version = 11 : i64} {
  func.func @dmgi_fused_kernel(%arg0: memref<256x64xf32, #tpu.memory_space<vmem>>, %arg1: memref<256x256xf32, #tpu.memory_space<vmem>>, %arg2: memref<160x32xf32, #tpu.memory_space<vmem>>, %arg3: memref<1x1xf32, #tpu.memory_space<smem>>, %arg4: memref<2x128xf32, #tpu.memory_space<vmem>>, %arg5: memref<64x32xf32, #tpu.memory_space<vmem>>, %arg6: memref<1x1xf32, #tpu.memory_space<vmem>>) attributes {dimension_semantics = [], scalar_prefetch = 0 : i64, scratch_operands = 0 : i64, tpu.core_type = #tpu.core_type<tc>} {
    %c0 = arith.constant 0 : index
    %c0_0 = arith.constant 0 : index
    %0 = memref.load %arg3[%c0, %c0_0] : memref<1x1xf32, #tpu.memory_space<smem>>
    %c0_1 = arith.constant 0 : index
    %c0_2 = arith.constant 0 : index
    %1 = vector.load %arg2[%c0_1, %c0_2] : memref<160x32xf32, #tpu.memory_space<vmem>>, vector<64x32xf32>
    %c64 = arith.constant 64 : index
    %c0_3 = arith.constant 0 : index
    %2 = vector.load %arg2[%c64, %c0_3] : memref<160x32xf32, #tpu.memory_space<vmem>>, vector<32x32xf32>
    %c96 = arith.constant 96 : index
    %c0_4 = arith.constant 0 : index
    %3 = vector.load %arg2[%c96, %c0_4] : memref<160x32xf32, #tpu.memory_space<vmem>>, vector<64x32xf32>
    %c0_5 = arith.constant 0 : index
    %c0_6 = arith.constant 0 : index
    %4 = vector.load %arg0[%c0_5, %c0_6] : memref<256x64xf32, #tpu.memory_space<vmem>>, vector<256x64xf32>
    %cst = arith.constant dense<0.000000e+00> : vector<256x32xf32>
    %5 = tpu.matmul %4, %1, %cst {dimension_numbers = #tpu.dot_dimension_numbers<[1], [0], [0], [1], [0, 0, 1, 1], [], []>} : vector<256x64xf32>, vector<64x32xf32>, vector<256x32xf32> -> vector<256x32xf32>
    %c0_7 = arith.constant 0 : index
    %c0_8 = arith.constant 0 : index
    %6 = vector.load %arg1[%c0_7, %c0_8] : memref<256x256xf32, #tpu.memory_space<vmem>>, vector<256x256xf32>
    %cst_9 = arith.constant dense<0.000000e+00> : vector<256x32xf32>
    %7 = tpu.matmul %6, %5, %cst_9 {dimension_numbers = #tpu.dot_dimension_numbers<[1], [0], [0], [1], [0, 0, 1, 1], [], []>} : vector<256x256xf32>, vector<256x32xf32>, vector<256x32xf32> -> vector<256x32xf32>
    %cst_10 = arith.constant 0.000000e+00 : f32
    %8 = vector.broadcast %cst_10 : f32 to vector<256x32xf32>
    %9 = arith.maximumf %7, %8 : vector<256x32xf32>
    %10 = tpu.iota {dimensions = array<i32: 1>} : vector<2x256xi32>
    %11 = tpu.iota {dimensions = array<i32: 0>} : vector<2x256xi32>
    %c128_i32 = arith.constant 128 : i32
    %12 = vector.broadcast %c128_i32 : i32 to vector<2x256xi32>
    %13 = arith.muli %11, %12 : vector<2x256xi32>
    %14 = arith.subi %10, %13 : vector<2x256xi32>
    %c0_i32 = arith.constant 0 : i32
    %15 = vector.broadcast %c0_i32 : i32 to vector<2x256xi32>
    %16 = arith.cmpi sge, %14, %15 : vector<2x256xi32>
    %c64_i32 = arith.constant 64 : i32
    %17 = vector.broadcast %c64_i32 : i32 to vector<2x256xi32>
    %18 = arith.cmpi slt, %14, %17 : vector<2x256xi32>
    %19 = arith.andi %16, %18 : vector<2x256xi1>
    %cst_11 = arith.constant 1.562500e-02 : f32
    %cst_12 = arith.constant 0.000000e+00 : f32
    %20 = vector.broadcast %cst_11 : f32 to vector<2x256xf32>
    %21 = vector.broadcast %cst_12 : f32 to vector<2x256xf32>
    %22 = arith.select %19, %20, %21 : vector<2x256xi1>, vector<2x256xf32>
    %cst_13 = arith.constant dense<0.000000e+00> : vector<2x32xf32>
    %23 = tpu.matmul %22, %9, %cst_13 {dimension_numbers = #tpu.dot_dimension_numbers<[1], [0], [0], [1], [0, 0, 1, 1], [], []>} : vector<2x256xf32>, vector<256x32xf32>, vector<2x32xf32> -> vector<2x32xf32>
    %24 = arith.negf %23 : vector<2x32xf32>
    %25 = math.exp %24 : vector<2x32xf32>
    %cst_14 = arith.constant 1.000000e+00 : f32
    %26 = vector.broadcast %cst_14 : f32 to vector<2x32xf32>
    %27 = arith.addf %26, %25 : vector<2x32xf32>
    %28 = arith.divf %26, %27 : vector<2x32xf32>
    %cst_15 = arith.constant dense<0.000000e+00> : vector<2x32xf32>
    %29 = tpu.matmul %28, %2, %cst_15 {dimension_numbers = #tpu.dot_dimension_numbers<[1], [0], [0], [1], [0, 0, 1, 1], [], []>} : vector<2x32xf32>, vector<32x32xf32>, vector<2x32xf32> -> vector<2x32xf32>
    %cst_16 = arith.constant dense<0.000000e+00> : vector<2x256xf32>
    %30 = tpu.matmul %29, %9, %cst_16 {dimension_numbers = #tpu.dot_dimension_numbers<[1], [1], [0], [0], [0, 0, 1, 0], [], []>} : vector<2x32xf32>, vector<256x32xf32>, vector<2x256xf32> -> vector<2x256xf32>
    %31 = vector.extract_strided_slice %30 {offsets = [0, 0], sizes = [1, 128], strides = [1, 1]} : vector<2x256xf32> to vector<1x128xf32>
    %32 = vector.extract_strided_slice %30 {offsets = [1, 128], sizes = [1, 128], strides = [1, 1]} : vector<2x256xf32> to vector<1x128xf32>
    %33 = tpu.concatenate %31, %32 in 0 : vector<1x128xf32>, vector<1x128xf32> -> vector<2x128xf32>
    %34 = vector.broadcast %0 : f32 to vector<2x128xf32>
    %35 = arith.addf %33, %34 : vector<2x128xf32>
    %c0_17 = arith.constant 0 : index
    %c0_18 = arith.constant 0 : index
    %36 = vector.load %arg4[%c0_17, %c0_18] : memref<2x128xf32, #tpu.memory_space<vmem>>, vector<2x128xf32>
    tpu.vector_store %arg4[%c0_17, %c0_18], %35 {strides = array<i32>} : memref<2x128xf32, #tpu.memory_space<vmem>>, vector<2x128xf32>,
    %37 = vector.extract_strided_slice %9 {offsets = [0, 0], sizes = [64, 32], strides = [1, 1]} : vector<256x32xf32> to vector<64x32xf32>
    %38 = vector.extract_strided_slice %9 {offsets = [64, 0], sizes = [64, 32], strides = [1, 1]} : vector<256x32xf32> to vector<64x32xf32>
    %39 = vector.extract_strided_slice %9 {offsets = [128, 0], sizes = [64, 32], strides = [1, 1]} : vector<256x32xf32> to vector<64x32xf32>
    %40 = arith.addf %37, %39 : vector<64x32xf32>
    %41 = vector.extract_strided_slice %9 {offsets = [192, 0], sizes = [64, 32], strides = [1, 1]} : vector<256x32xf32> to vector<64x32xf32>
    %42 = arith.addf %38, %41 : vector<64x32xf32>
    %cst_19 = arith.constant 5.000000e-01 : f32
    %43 = vector.broadcast %cst_19 : f32 to vector<64x32xf32>
    %44 = arith.mulf %40, %43 : vector<64x32xf32>
    %cst_20 = arith.constant 5.000000e-01 : f32
    %45 = vector.broadcast %cst_20 : f32 to vector<64x32xf32>
    %46 = arith.mulf %42, %45 : vector<64x32xf32>
    %c0_21 = arith.constant 0 : index
    %c0_22 = arith.constant 0 : index
    %47 = vector.load %arg5[%c0_21, %c0_22] : memref<64x32xf32, #tpu.memory_space<vmem>>, vector<64x32xf32>
    tpu.vector_store %arg5[%c0_21, %c0_22], %44 {strides = array<i32>} : memref<64x32xf32, #tpu.memory_space<vmem>>, vector<64x32xf32>,
    %48 = arith.subf %3, %44 : vector<64x32xf32>
    %49 = arith.subf %3, %46 : vector<64x32xf32>
    %50 = arith.mulf %48, %48 : vector<64x32xf32>
    %51 = arith.mulf %49, %49 : vector<64x32xf32>
    %52 = arith.subf %50, %51 : vector<64x32xf32>
    %53 = vector.shape_cast %52 : vector<64x32xf32> to vector<1x64x32xf32>
    %cst_23 = arith.constant dense<0.000000e+00> : vector<1xf32>
    %54 = vector.multi_reduction <add>, %53, %cst_23 [1, 2] : vector<1x64x32xf32> to vector<1xf32>
    %55 = vector.shape_cast %54 : vector<1xf32> to vector<1x1x1xf32>
    %56 = vector.extract %55[0, 0, 0] : f32 from vector<1x1x1xf32>
    %57 = vector.broadcast %56 : f32 to vector<1x1xf32>
    %c0_24 = arith.constant 0 : index
    %c0_25 = arith.constant 0 : index
    %58 = vector.load %arg6[%c0_24, %c0_25] : memref<1x1xf32, #tpu.memory_space<vmem>>, vector<1x1xf32>
    tpu.vector_store %arg6[%c0_24, %c0_25], %57 {strides = array<i32>} : memref<1x1xf32, #tpu.memory_space<vmem>>, vector<1x1xf32>,
    return
  }
}

</mosaic_0001>

<llo_original>
// kernel: dmgi_forward.1
$region0: #{dmgi_forward.1}
  #allocation0 [shape = 'u32[]', space=smem, size = 0x4, offset = 0x4, fixed_abs, tag = 'smem constant byte address 0x4 - core index']
  #allocation1 [shape = 'u32[144,128]{1,0:T(1,128)}', space=vmem, size = 0x12000, scoped, tag = 'internal scratch']
  #allocation2 [shape = 'f32[1,1]{1,0:T(1,128)S(6)}', space=smem, size = 0x200, scoped, tag = 'scoped memory for dmgi_forward.1']
  %s0 = inlined_call_operand.vmem [shape: f32[256,64], index: 0, kind: input, shape index: {}]
  %s1 = inlined_call_operand.vmem [shape: f32[256,256], index: 1, kind: input, shape index: {}]
  %s2 = inlined_call_operand.vmem [shape: f32[160,32], index: 2, kind: input, shape index: {}]
  %s3 = inlined_call_operand.<no memory space> [shape: f32[1,1], index: 3, kind: input, shape index: {}]
  %s4 = inlined_call_operand.vmem [shape: f32[2,128], index: 4, kind: output, shape index: {0}]
  %s5 = inlined_call_operand.vmem [shape: f32[64,32], index: 5, kind: output, shape index: {1}]
  %s6 = inlined_call_operand.hbm [shape: f32[1,1], index: 6, kind: output, shape index: {2}]
  %7 = xla_tuple %s4, %s5, %s6
  %s8 = sld [smem:[#allocation0]]
  $region42: #{dmgi_forward.1} parent=0
    _
  %s10 = ssub.s32 1, %s8
  %s11 = scalar_select 0, %s10, %s8
  %12 = sst [smem:[#allocation2]] %s3
  $region1: #{dmgi_forward.1} parent=0
    #allocation3 [shape = 'u8[512]{0}', space=vmem, size = 0x400, scoped, tag = 'output window, operand 2, single buffered']
    #allocation4 [shape = 's32[1]{0}', space=sflag, size = 0x4, scoped, tag = 'scoped memory for dmgi_forward.1']
    %13 = vsyncpa [#allocation4], 0
    // Predicated region
    $region2: #{dmgi_forward.1} parent=1 // pred_check
      _
    $region3: #{dmgi_forward.1} parent=1 // pred_check_branch
      %15 = sbr.rel (0) target = $region5
    $region4: #{dmgi_forward.1} parent=1 // pred_region
      _
    $region5: #{dmgi_forward.1} parent=1 // pred_fallthru
      _
    // Predicated region
    $region6: #{dmgi_forward.1} parent=1 // pred_check
      _
    $region7: #{dmgi_forward.1} parent=1 // pred_check_branch
      %17 = sbr.rel (0) target = $region9
    $region8: #{dmgi_forward.1} parent=1 // pred_region
      _
    $region9: #{dmgi_forward.1} parent=1 // pred_fallthru
      _
    // Predicated region
    $region10: #{dmgi_forward.1} parent=1 // pred_check
      _
    $region11: #{dmgi_forward.1} parent=1 // pred_check_branch
      %19 = sbr.rel (0) target = $region13
    $region12: #{dmgi_forward.1} parent=1 // pred_region
      _
    $region13: #{dmgi_forward.1} parent=1 // pred_fallthru
      _
    // Predicated region
    $region14: #{dmgi_forward.1} parent=1 // pred_check
      _
    $region15: #{dmgi_forward.1} parent=1 // pred_check_branch
      %21 = sbr.rel (0) target = $region17
    $region16: #{dmgi_forward.1} parent=1 // pred_region
      _
    $region17: #{dmgi_forward.1} parent=1 // pred_fallthru
      _
    %s22 = sld [smem:[#allocation2]]
    %v23 = vld [vmem:[%s2] sm:$0xff]
    %v24 = vld [vmem:[%s2 + $0x8] sm:$0xff]
    %v25 = vld [vmem:[%s2 + $0x10] sm:$0xff]
    %v26 = vld [vmem:[%s2 + $0x18] sm:$0xff]
    %v27 = vld [vmem:[%s2 + $0x20] sm:$0xff]
    %v28 = vld [vmem:[%s2 + $0x28] sm:$0xff]
    %v29 = vld [vmem:[%s2 + $0x30] sm:$0xff]
    %v30 = vld [vmem:[%s2 + $0x38] sm:$0xff]
    %v31 = vld [vmem:[%s2 + $0x40] sm:$0xff]
    %v32 = vld [vmem:[%s2 + $0x48] sm:$0xff]
    %v33 = vld [vmem:[%s2 + $0x50] sm:$0xff]
    %v34 = vld [vmem:[%s2 + $0x58] sm:$0xff]
    %v35 = vld [vmem:[%s2 + $0x60] sm:$0xff]
    %v36 = vld [vmem:[%s2 + $0x68] sm:$0xff]
    %v37 = vld [vmem:[%s2 + $0x70] sm:$0xff]
    %v38 = vld [vmem:[%s2 + $0x78] sm:$0xff]
    %v39 = vld [vmem:[%s2 + $0x80] sm:$0xff]
    %v40 = vld [vmem:[%s2 + $0x88] sm:$0xff]
    %v41 = vld [vmem:[%s2 + $0x90] sm:$0xff]
    %v42 = vld [vmem:[%s2 + $0x98] sm:$0xff]
    %v43 = vld [vmem:[%s0] sm:$0xff]
    %v44 = vld [vmem:[%s0 + $0x8] sm:$0xff]
    %v45 = vld [vmem:[%s0 + $0x10] sm:$0xff]
    %v46 = vld [vmem:[%s0 + $0x18] sm:$0xff]
    %v47 = vld [vmem:[%s0 + $0x20] sm:$0xff]
    %v48 = vld [vmem:[%s0 + $0x28] sm:$0xff]
    %v49 = vld [vmem:[%s0 + $0x30] sm:$0xff]
    %v50 = vld [vmem:[%s0 + $0x38] sm:$0xff]
    %v51 = vld [vmem:[%s0 + $0x40] sm:$0xff]
    %v52 = vld [vmem:[%s0 + $0x48] sm:$0xff]
    %v53 = vld [vmem:[%s0 + $0x50] sm:$0xff]
    %v54 = vld [vmem:[%s0 + $0x58] sm:$0xff]
    %v55 = vld [vmem:[%s0 + $0x60] sm:$0xff]
    %v56 = vld [vmem:[%s0 + $0x68] sm:$0xff]
    %v57 = vld [vmem:[%s0 + $0x70] sm:$0xff]
    %v58 = vld [vmem:[%s0 + $0x78] sm:$0xff]
    %v59 = vld [vmem:[%s0 + $0x80] sm:$0xff]
    %v60 = vld [vmem:[%s0 + $0x88] sm:$0xff]
    %v61 = vld [vmem:[%s0 + $0x90] sm:$0xff]
    %v62 = vld [vmem:[%s0 + $0x98] sm:$0xff]
    %v63 = vld [vmem:[%s0 + $0xa0] sm:$0xff]
    %v64 = vld [vmem:[%s0 + $0xa8] sm:$0xff]
    %v65 = vld [vmem:[%s0 + $0xb0] sm:$0xff]
    %v66 = vld [vmem:[%s0 + $0xb8] sm:$0xff]
    %v67 = vld [vmem:[%s0 + $0xc0] sm:$0xff]
    %v68 = vld [vmem:[%s0 + $0xc8] sm:$0xff]
    %v69 = vld [vmem:[%s0 + $0xd0] sm:$0xff]
    %v70 = vld [vmem:[%s0 + $0xd8] sm:$0xff]
    %v71 = vld [vmem:[%s0 + $0xe0] sm:$0xff]
    %v72 = vld [vmem:[%s0 + $0xe8] sm:$0xff]
    %v73 = vld [vmem:[%s0 + $0xf0] sm:$0xff]
    %v74 = vld [vmem:[%s0 + $0xf8] sm:$0xff]
    %vm75 = vcmask 523264
    %v77 = vsel %vm75, %v43, 0
    %v80 = vsel %vm75, %v44, 0
    %v83 = vsel %vm75, %v45, 0
    %v86 = vsel %vm75, %v46, 0
    %v89 = vsel %vm75, %v47, 0
    %v92 = vsel %vm75, %v48, 0
    %v95 = vsel %vm75, %v49, 0
    %v98 = vsel %vm75, %v50, 0
    %v101 = vsel %vm75, %v51, 0
    %v104 = vsel %vm75, %v52, 0
    %v107 = vsel %vm75, %v53, 0
    %v110 = vsel %vm75, %v54, 0
    %v113 = vsel %vm75, %v55, 0
    %v116 = vsel %vm75, %v56, 0
    %v119 = vsel %vm75, %v57, 0
    %v122 = vsel %vm75, %v58, 0
    %v125 = vsel %vm75, %v59, 0
    %v128 = vsel %vm75, %v60, 0
    %v131 = vsel %vm75, %v61, 0
    %v134 = vsel %vm75, %v62, 0
    %v137 = vsel %vm75, %v63, 0
    %v140 = vsel %vm75, %v64, 0
    %v143 = vsel %vm75, %v65, 0
    %v146 = vsel %vm75, %v66, 0
    %v149 = vsel %vm75, %v67, 0
    %v152 = vsel %vm75, %v68, 0
    %v155 = vsel %vm75, %v69, 0
    %v158 = vsel %vm75, %v70, 0
    %v161 = vsel %vm75, %v71, 0
    %v164 = vsel %vm75, %v72, 0
    %v167 = vsel %vm75, %v73, 0
    %v170 = vsel %vm75, %v74, 0
    %172 = vmatprep.subr.mxu0 0.0
    %173 = vmatpush1.msra.mxu0 %v23
    %174 = vmatprep.subr.mxu0 0.0
    %175 = vmatpush1.msra.mxu0 %v24
    %176 = vmatprep.subr.mxu0 0.0
    %177 = vmatpush1.msra.mxu0 %v25
    %178 = vmatprep.subr.mxu0 0.0
    %179 = vmatpush1.msra.mxu0 %v26
    %180 = vmatprep.subr.mxu0 0.0
    %181 = vmatpush1.msra.mxu0 %v27
    %182 = vmatprep.subr.mxu0 0.0
    %183 = vmatpush1.msra.mxu0 %v28
    %184 = vmatprep.subr.mxu0 0.0
    %185 = vmatpush1.msra.mxu0 %v29
    %186 = vmatprep.subr.mxu0 0.0
    %187 = vmatpush1.msra.mxu0 %v30
    %188 = vmatprep.subr.mxu0 0.0
    %189 = vmatpush1.msra.mxu0 0.0
    %190 = vmatprep.subr.mxu0 0.0
    %191 = vmatpush1.msra.mxu0 0.0
    %192 = vmatprep.subr.mxu0 0.0
    %193 = vmatpush1.msra.mxu0 0.0
    %194 = vmatprep.subr.mxu0 0.0
    %195 = vmatpush1.msra.mxu0 0.0
    %196 = vmatprep.subr.mxu0 0.0
    %197 = vmatpush1.msra.mxu0 0.0
    %198 = vmatprep.subr.mxu0 0.0
    %199 = vmatpush1.msra.mxu0 0.0
    %200 = vmatprep.subr.mxu0 0.0
    %201 = vmatpush1.msra.mxu0 0.0
    %202 = vmatprep.subr.mxu0 0.0
    %203 = vmatpush1.msra.mxu0 0.0
    %204 = vmatprep.subr.mxu0 0.0
    %205 = vmatpush1.msra.mxu0 0.0
    %206 = vmatprep.subr.mxu0 0.0
    %207 = vmatpush1.msra.mxu0 0.0
    %208 = vmatprep.subr.mxu0 0.0
    %209 = vmatpush1.msra.mxu0 0.0
    %210 = vmatprep.subr.mxu0 0.0
    %211 = vmatpush1.msra.mxu0 0.0
    %212 = vmatprep.subr.mxu0 0.0
    %213 = vmatpush1.msra.mxu0 0.0
    %214 = vmatprep.subr.mxu0 0.0
    %215 = vmatpush1.msra.mxu0 0.0
    %216 = vmatprep.subr.mxu0 0.0
    %217 = vmatpush1.msra.mxu0 0.0
    %218 = vmatprep.subr.mxu0 0.0
    %219 = vmatpush1.msra.mxu0 0.0
    %220 = vmatprep.subr.mxu0 0.0
    %221 = vmatpush1.msra.mxu0 0.0
    %222 = vmatprep.subr.mxu0 0.0
    %223 = vmatpush1.msra.mxu0 0.0
    %224 = vmatprep.subr.mxu0 0.0
    %225 = vmatpush1.msra.mxu0 0.0
    %226 = vmatprep.subr.mxu0 0.0
    %227 = vmatpush1.msra.mxu0 0.0
    %228 = vmatprep.subr.mxu0 0.0
    %229 = vmatpush1.msra.mxu0 0.0
    %230 = vmatprep.subr.mxu0 0.0
    %231 = vmatpush1.msra.mxu0 0.0
    %232 = vmatprep.subr.mxu0 0.0
    %233 = vmatpush1.msra.mxu0 0.0
    %234 = vmatprep.subr.mxu0 0.0
    %235 = vmatpush1.msra.mxu0 0.0
    %236 = vmatprep.mubr.f32.mxu0 0.0
    %237 = vmatmul.mubr.f32.gmra.mrb[0].mxu0 %v77
    %v238 = vpop.f32.mrb[0].mxu0
    %v239 = vadd.f32 0.0, %v238
    %v240 = vpop.f32.mrb[0].mxu0
    %241 = vmatprep.mubr.f32.mxu0 0.0
    %242 = vmatmul.mubr.f32.gmra.mrb[0].mxu0 %v80
    %v243 = vpop.f32.mrb[0].mxu0
    %v244 = vadd.f32 0.0, %v243
    %v245 = vpop.f32.mrb[0].mxu0
    %246 = vmatprep.mubr.f32.mxu0 0.0
    %247 = vmatmul.mubr.f32.gmra.mrb[0].mxu0 %v83
    %v248 = vpop.f32.mrb[0].mxu0
    %v249 = vadd.f32 0.0, %v248
    %v250 = vpop.f32.mrb[0].mxu0
    %251 = vmatprep.mubr.f32.mxu0 0.0
    %252 = vmatmul.mubr.f32.gmra.mrb[0].mxu0 %v86
    %v253 = vpop.f32.mrb[0].mxu0
    %v254 = vadd.f32 0.0, %v253
    %v255 = vpop.f32.mrb[0].mxu0
    %256 = vmatprep.mubr.f32.mxu0 0.0
    %257 = vmatmul.mubr.f32.gmra.mrb[0].mxu0 %v89
    %v258 = vpop.f32.mrb[0].mxu0
    %v259 = vadd.f32 0.0, %v258
    %v260 = vpop.f32.mrb[0].mxu0
    %261 = vmatprep.mubr.f32.mxu0 0.0
    %262 = vmatmul.mubr.f32.gmra.mrb[0].mxu0 %v92
    %v263 = vpop.f32.mrb[0].mxu0
    %v264 = vadd.f32 0.0, %v263
    %v265 = vpop.f32.mrb[0].mxu0
    %266 = vmatprep.mubr.f32.mxu0 0.0
    %267 = vmatmul.mubr.f32.gmra.mrb[0].mxu0 %v95
    %v268 = vpop.f32.mrb[0].mxu0
    %v269 = vadd.f32 0.0, %v268
    %v270 = vpop.f32.mrb[0].mxu0
    %271 = vmatprep.mubr.f32.mxu0 0.0
    %272 = vmatmul.mubr.f32.gmra.mrb[0].mxu0 %v98
    %v273 = vpop.f32.mrb[0].mxu0
    %v274 = vadd.f32 0.0, %v273
    %v275 = vpop.f32.mrb[0].mxu0
    %276 = vmatprep.mubr.f32.mxu0 0.0
    %277 = vmatmul.mubr.f32.gmra.mrb[0].mxu0 %v101
    %v278 = vpop.f32.mrb[0].mxu0
    %v279 = vadd.f32 0.0, %v278
    %v280 = vpop.f32.mrb[0].mxu0
    %281 = vmatprep.mubr.f32.mxu0 0.0
    %282 = vmatmul.mubr.f32.gmra.mrb[0].mxu0 %v104
    %v283 = vpop.f32.mrb[0].mxu0
    %v284 = vadd.f32 0.0, %v283
    %v285 = vpop.f32.mrb[0].mxu0
    %286 = vmatprep.mubr.f32.mxu0 0.0
    %287 = vmatmul.mubr.f32.gmra.mrb[0].mxu0 %v107
    %v288 = vpop.f32.mrb[0].mxu0
    %v289 = vadd.f32 0.0, %v288
    %v290 = vpop.f32.mrb[0].mxu0
    %291 = vmatprep.mubr.f32.mxu0 0.0
    %292 = vmatmul.mubr.f32.gmra.mrb[0].mxu0 %v110
    %v293 = vpop.f32.mrb[0].mxu0
    %v294 = vadd.f32 0.0, %v293
    %v295 = vpop.f32.mrb[0].mxu0
    %296 = vmatprep.mubr.f32.mxu0 0.0
    %297 = vmatmul.mubr.f32.gmra.mrb[0].mxu0 %v113
    %v298 = vpop.f32.mrb[0].mxu0
    %v299 = vadd.f32 0.0, %v298
    %v300 = vpop.f32.mrb[0].mxu0
    %301 = vmatprep.mubr.f32.mxu0 0.0
    %302 = vmatmul.mubr.f32.gmra.mrb[0].mxu0 %v116
    %v303 = vpop.f32.mrb[0].mxu0
    %v304 = vadd.f32 0.0, %v303
    %v305 = vpop.f32.mrb[0].mxu0
    %306 = vmatprep.mubr.f32.mxu0 0.0
    %307 = vmatmul.mubr.f32.gmra.mrb[0].mxu0 %v119
    %v308 = vpop.f32.mrb[0].mxu0
    %v309 = vadd.f32 0.0, %v308
    %v310 = vpop.f32.mrb[0].mxu0
    %311 = vmatprep.mubr.f32.mxu0 0.0
    %312 = vmatmul.mubr.f32.gmra.mrb[0].mxu0 %v122
    %v313 = vpop.f32.mrb[0].mxu0
    %v314 = vadd.f32 0.0, %v313
    %v315 = vpop.f32.mrb[0].mxu0
    %316 = vmatprep.mubr.f32.mxu0 0.0
    %317 = vmatmul.mubr.f32.gmra.mrb[0].mxu0 %v125
    %v318 = vpop.f32.mrb[0].mxu0
    %v319 = vadd.f32 0.0, %v318
    %v320 = vpop.f32.mrb[0].mxu0
    %321 = vmatprep.mubr.f32.mxu0 0.0
    %322 = vmatmul.mubr.f32.gmra.mrb[0].mxu0 %v128
    %v323 = vpop.f32.mrb[0].mxu0
    %v324 = vadd.f32 0.0, %v323
    %v325 = vpop.f32.mrb[0].mxu0
    %326 = vmatprep.mubr.f32.mxu0 0.0
    %327 = vmatmul.mubr.f32.gmra.mrb[0].mxu0 %v131
    %v328 = vpop.f32.mrb[0].mxu0
    %v329 = vadd.f32 0.0, %v328
    %v330 = vpop.f32.mrb[0].mxu0
    %331 = vmatprep.mubr.f32.mxu0 0.0
    %332 = vmatmul.mubr.f32.gmra.mrb[0].mxu0 %v134
    %v333 = vpop.f32.mrb[0].mxu0
    %v334 = vadd.f32 0.0, %v333
    %v335 = vpop.f32.mrb[0].mxu0
    %336 = vmatprep.mubr.f32.mxu0 0.0
    %337 = vmatmul.mubr.f32.gmra.mrb[0].mxu0 %v137
    %v338 = vpop.f32.mrb[0].mxu0
    %v339 = vadd.f32 0.0, %v338
    %v340 = vpop.f32.mrb[0].mxu0
    %341 = vmatprep.mubr.f32.mxu0 0.0
    %342 = vmatmul.mubr.f32.gmra.mrb[0].mxu0 %v140
    %v343 = vpop.f32.mrb[0].mxu0
    %v344 = vadd.f32 0.0, %v343
    %v345 = vpop.f32.mrb[0].mxu0
    %346 = vmatprep.mubr.f32.mxu0 0.0
    %347 = vmatmul.mubr.f32.gmra.mrb[0].mxu0 %v143
    %v348 = vpop.f32.mrb[0].mxu0
    %v349 = vadd.f32 0.0, %v348
    %v350 = vpop.f32.mrb[0].mxu0
    %351 = vmatprep.mubr.f32.mxu0 0.0
    %352 = vmatmul.mubr.f32.gmra.mrb[0].mxu0 %v146
    %v353 = vpop.f32.mrb[0].mxu0
    %v354 = vadd.f32 0.0, %v353
    %v355 = vpop.f32.mrb[0].mxu0
    %356 = vmatprep.mubr.f32.mxu0 0.0
    %357 = vmatmul.mubr.f32.gmra.mrb[0].mxu0 %v149
    %v358 = vpop.f32.mrb[0].mxu0
    %v359 = vadd.f32 0.0, %v358
    %v360 = vpop.f32.mrb[0].mxu0
    %361 = vmatprep.mubr.f32.mxu0 0.0
    %362 = vmatmul.mubr.f32.gmra.mrb[0].mxu0 %v152
    %v363 = vpop.f32.mrb[0].mxu0
    %v364 = vadd.f32 0.0, %v363
    %v365 = vpop.f32.mrb[0].mxu0
    %366 = vmatprep.mubr.f32.mxu0 0.0
    %367 = vmatmul.mubr.f32.gmra.mrb[0].mxu0 %v155
    %v368 = vpop.f32.mrb[0].mxu0
    %v369 = vadd.f32 0.0, %v368
    %v370 = vpop.f32.mrb[0].mxu0
    %371 = vmatprep.mubr.f32.mxu0 0.0
    %372 = vmatmul.mubr.f32.gmra.mrb[0].mxu0 %v158
    %v373 = vpop.f32.mrb[0].mxu0
    %v374 = vadd.f32 0.0, %v373
    %v375 = vpop.f32.mrb[0].mxu0
    %376 = vmatprep.mubr.f32.mxu0 0.0
    %377 = vmatmul.mubr.f32.gmra.mrb[0].mxu0 %v161
    %v378 = vpop.f32.mrb[0].mxu0
    %v379 = vadd.f32 0.0, %v378
    %v380 = vpop.f32.mrb[0].mxu0
    %381 = vmatprep.mubr.f32.mxu0 0.0
    %382 = vmatmul.mubr.f32.gmra.mrb[0].mxu0 %v164
    %v383 = vpop.f32.mrb[0].mxu0
    %v384 = vadd.f32 0.0, %v383
    %v385 = vpop.f32.mrb[0].mxu0
    %386 = vmatprep.mubr.f32.mxu0 0.0
    %387 = vmatmul.mubr.f32.gmra.mrb[0].mxu0 %v167
    %v388 = vpop.f32.mrb[0].mxu0
    %v389 = vadd.f32 0.0, %v388
    %v390 = vpop.f32.mrb[0].mxu0
    %391 = vmatprep.mubr.f32.mxu0 0.0
    %392 = vmatmul.mubr.f32.gmra.mrb[0].mxu0 %v170
    %v393 = vpop.f32.mrb[0].mxu0
    %v394 = vadd.f32 0.0, %v393
    %v395 = vpop.f32.mrb[0].mxu0
    %396 = vdwg.mxu0
    %v397 = vld [vmem:[%s1] sm:$0xff]
    %v398 = vld [vmem:[%s1 + $0x8] sm:$0xff]
    %v399 = vld [vmem:[%s1 + $0x10] sm:$0xff]
    %v400 = vld [vmem:[%s1 + $0x18] sm:$0xff]
    %v401 = vld [vmem:[%s1 + $0x20] sm:$0xff]
    %v402 = vld [vmem:[%s1 + $0x28] sm:$0xff]
    %v403 = vld [vmem:[%s1 + $0x30] sm:$0xff]
    %v404 = vld [vmem:[%s1 + $0x38] sm:$0xff]
    %v405 = vld [vmem:[%s1 + $0x40] sm:$0xff]
    %v406 = vld [vmem:[%s1 + $0x48] sm:$0xff]
    %v407 = vld [vmem:[%s1 + $0x50] sm:$0xff]
    %v408 = vld [vmem:[%s1 + $0x58] sm:$0xff]
    %v409 = vld [vmem:[%s1 + $0x60] sm:$0xff]
    %v410 = vld [vmem:[%s1 + $0x68] sm:$0xff]
    %v411 = vld [vmem:[%s1 + $0x70] sm:$0xff]
    %v412 = vld [vmem:[%s1 + $0x78] sm:$0xff]
    %v413 = vld [vmem:[%s1 + $0x80] sm:$0xff]
    %v414 = vld [vmem:[%s1 + $0x88] sm:$0xff]
    %v415 = vld [vmem:[%s1 + $0x90] sm:$0xff]
    %v416 = vld [vmem:[%s1 + $0x98] sm:$0xff]
    %v417 = vld [vmem:[%s1 + $0xa0] sm:$0xff]
    %v418 = vld [vmem:[%s1 + $0xa8] sm:$0xff]
    %v419 = vld [vmem:[%s1 + $0xb0] sm:$0xff]
    %v420 = vld [vmem:[%s1 + $0xb8] sm:$0xff]
    %v421 = vld [vmem:[%s1 + $0xc0] sm:$0xff]
    %v422 = vld [vmem:[%s1 + $0xc8] sm:$0xff]
    %v423 = vld [vmem:[%s1 + $0xd0] sm:$0xff]
    %v424 = vld [vmem:[%s1 + $0xd8] sm:$0xff]
    %v425 = vld [vmem:[%s1 + $0xe0] sm:$0xff]
    %v426 = vld [vmem:[%s1 + $0xe8] sm:$0xff]
    %v427 = vld [vmem:[%s1 + $0xf0] sm:$0xff]
    %v428 = vld [vmem:[%s1 + $0xf8] sm:$0xff]
    %v429 = vld [vmem:[%s1 + $0x100] sm:$0xff]
    %v430 = vld [vmem:[%s1 + $0x108] sm:$0xff]
    %v431 = vld [vmem:[%s1 + $0x110] sm:$0xff]
    %v432 = vld [vmem:[%s1 + $0x118] sm:$0xff]
    %v433 = vld [vmem:[%s1 + $0x120] sm:$0xff]
    %v434 = vld [vmem:[%s1 + $0x128] sm:$0xff]
    %v435 = vld [vmem:[%s1 + $0x130] sm:$0xff]
    %v436 = vld [vmem:[%s1 + $0x138] sm:$0xff]
    %v437 = vld [vmem:[%s1 + $0x140] sm:$0xff]
    %v438 = vld [vmem:[%s1 + $0x148] sm:$0xff]
    %v439 = vld [vmem:[%s1 + $0x150] sm:$0xff]
    %v440 = vld [vmem:[%s1 + $0x158] sm:$0xff]
    %v441 = vld [vmem:[%s1 + $0x160] sm:$0xff]
    %v442 = vld [vmem:[%s1 + $0x168] sm:$0xff]
    %v443 = vld [vmem:[%s1 + $0x170] sm:$0xff]
    %v444 = vld [vmem:[%s1 + $0x178] sm:$0xff]
    %v445 = vld [vmem:[%s1 + $0x180] sm:$0xff]
    %v446 = vld [vmem:[%s1 + $0x188] sm:$0xff]
    %v447 = vld [vmem:[%s1 + $0x190] sm:$0xff]
    %v448 = vld [vmem:[%s1 + $0x198] sm:$0xff]
    %v449 = vld [vmem:[%s1 + $0x1a0] sm:$0xff]
    %v450 = vld [vmem:[%s1 + $0x1a8] sm:$0xff]
    %v451 = vld [vmem:[%s1 + $0x1b0] sm:$0xff]
    %v452 = vld [vmem:[%s1 + $0x1b8] sm:$0xff]
    %v453 = vld [vmem:[%s1 + $0x1c0] sm:$0xff]
    %v454 = vld [vmem:[%s1 + $0x1c8] sm:$0xff]
    %v455 = vld [vmem:[%s1 + $0x1d0] sm:$0xff]
    %v456 = vld [vmem:[%s1 + $0x1d8] sm:$0xff]
    %v457 = vld [vmem:[%s1 + $0x1e0] sm:$0xff]
    %v458 = vld [vmem:[%s1 + $0x1e8] sm:$0xff]
    %v459 = vld [vmem:[%s1 + $0x1f0] sm:$0xff]
    %v460 = vld [vmem:[%s1 + $0x1f8] sm:$0xff]
    %461 = vmatprep.subr.mxu0 0.0
    %462 = vmatpush1.msra.mxu0 %v239
    %463 = vmatprep.subr.mxu0 0.0
    %464 = vmatpush1.msra.mxu0 %v244
    %465 = vmatprep.subr.mxu0 0.0
    %466 = vmatpush1.msra.mxu0 %v249
    %467 = vmatprep.subr.mxu0 0.0
    %468 = vmatpush1.msra.mxu0 %v254
    %469 = vmatprep.subr.mxu0 0.0
    %470 = vmatpush1.msra.mxu0 %v259
    %471 = vmatprep.subr.mxu0 0.0
    %472 = vmatpush1.msra.mxu0 %v264
    %473 = vmatprep.subr.mxu0 0.0
    %474 = vmatpush1.msra.mxu0 %v269
    %475 = vmatprep.subr.mxu0 0.0
    %476 = vmatpush1.msra.mxu0 %v274
    %477 = vmatprep.subr.mxu0 0.0
    %478 = vmatpush1.msra.mxu0 %v279
    %479 = vmatprep.subr.mxu0 0.0
    %480 = vmatpush1.msra.mxu0 %v284
    %481 = vmatprep.subr.mxu0 0.0
    %482 = vmatpush1.msra.mxu0 %v289
    %483 = vmatprep.subr.mxu0 0.0
    %484 = vmatpush1.msra.mxu0 %v294
    %485 = vmatprep.subr.mxu0 0.0
    %486 = vmatpush1.msra.mxu0 %v299
    %487 = vmatprep.subr.mxu0 0.0
    %488 = vmatpush1.msra.mxu0 %v304
    %489 = vmatprep.subr.mxu0 0.0
    %490 = vmatpush1.msra.mxu0 %v309
    %491 = vmatprep.subr.mxu0 0.0
    %492 = vmatpush1.msra.mxu0 %v314
    %493 = vmatprep.subr.mxu0 0.0
    %494 = vmatpush1.msra.mxu0 %v319
    %495 = vmatprep.subr.mxu0 0.0
    %496 = vmatpush1.msra.mxu0 %v324
    %497 = vmatprep.subr.mxu0 0.0
    %498 = vmatpush1.msra.mxu0 %v329
    %499 = vmatprep.subr.mxu0 0.0
    %500 = vmatpush1.msra.mxu0 %v334
    %501 = vmatprep.subr.mxu0 0.0
    %502 = vmatpush1.msra.mxu0 %v339
    %503 = vmatprep.subr.mxu0 0.0
    %504 = vmatpush1.msra.mxu0 %v344
    %505 = vmatprep.subr.mxu0 0.0
    %506 = vmatpush1.msra.mxu0 %v349
    %507 = vmatprep.subr.mxu0 0.0
    %508 = vmatpush1.msra.mxu0 %v354
    %509 = vmatprep.subr.mxu0 0.0
    %510 = vmatpush1.msra.mxu0 %v359
    %511 = vmatprep.subr.mxu0 0.0
    %512 = vmatpush1.msra.mxu0 %v364
    %513 = vmatprep.subr.mxu0 0.0
    %514 = vmatpush1.msra.mxu0 %v369
    %515 = vmatprep.subr.mxu0 0.0
    %516 = vmatpush1.msra.mxu0 %v374
    %517 = vmatprep.subr.mxu0 0.0
    %518 = vmatpush1.msra.mxu0 %v379
    %519 = vmatprep.subr.mxu0 0.0
    %520 = vmatpush1.msra.mxu0 %v384
    %521 = vmatprep.subr.mxu0 0.0
    %522 = vmatpush1.msra.mxu0 %v389
    %523 = vmatprep.subr.mxu0 0.0
    %524 = vmatpush1.msra.mxu0 %v394
    %525 = vmatprep.mubr.f32.mxu0 %v398
    %526 = vmatmul.mubr.f32.gmra.mrb[0].mxu0 %v397
    %v527 = vpop.f32.mrb[0].mxu0
    %v528 = vadd.f32 0.0, %v527
    %v529 = vpop.f32.mrb[0].mxu0
    %530 = vmatprep.mubr.f32.mxu0 %v400
    %531 = vmatmul.mubr.f32.gmra.mrb[0].mxu0 %v399
    %v532 = vpop.f32.mrb[0].mxu0
    %v533 = vadd.f32 0.0, %v532
    %v534 = vpop.f32.mrb[0].mxu0
    %535 = vmatprep.mubr.f32.mxu0 %v402
    %536 = vmatmul.mubr.f32.gmra.mrb[0].mxu0 %v401
    %v537 = vpop.f32.mrb[0].mxu0
    %v538 = vadd.f32 0.0, %v537
    %v539 = vpop.f32.mrb[0].mxu0
    %540 = vmatprep.mubr.f32.mxu0 %v404
    %541 = vmatmul.mubr.f32.gmra.mrb[0].mxu0 %v403
    %v542 = vpop.f32.mrb[0].mxu0
    %v543 = vadd.f32 0.0, %v542
    %v544 = vpop.f32.mrb[0].mxu0
    %545 = vmatprep.mubr.f32.mxu0 %v406
    %546 = vmatmul.mubr.f32.gmra.mrb[0].mxu0 %v405
    %v547 = vpop.f32.mrb[0].mxu0
    %v548 = vadd.f32 0.0, %v547
    %v549 = vpop.f32.mrb[0].mxu0
    %550 = vmatprep.mubr.f32.mxu0 %v408
    %551 = vmatmul.mubr.f32.gmra.mrb[0].mxu0 %v407
    %v552 = vpop.f32.mrb[0].mxu0
    %v553 = vadd.f32 0.0, %v552
    %v554 = vpop.f32.mrb[0].mxu0
    %555 = vmatprep.mubr.f32.mxu0 %v410
    %556 = vmatmul.mubr.f32.gmra.mrb[0].mxu0 %v409
    %v557 = vpop.f32.mrb[0].mxu0
    %v558 = vadd.f32 0.0, %v557
    %v559 = vpop.f32.mrb[0].mxu0
    %560 = vmatprep.mubr.f32.mxu0 %v412
    %561 = vmatmul.mubr.f32.gmra.mrb[0].mxu0 %v411
    %v562 = vpop.f32.mrb[0].mxu0
    %v563 = vadd.f32 0.0, %v562
    %v564 = vpop.f32.mrb[0].mxu0
    %565 = vmatprep.mubr.f32.mxu0 %v414
    %566 = vmatmul.mubr.f32.gmra.mrb[0].mxu0 %v413
    %v567 = vpop.f32.mrb[0].mxu0
    %v568 = vadd.f32 0.0, %v567
    %v569 = vpop.f32.mrb[0].mxu0
    %570 = vmatprep.mubr.f32.mxu0 %v416
    %571 = vmatmul.mubr.f32.gmra.mrb[0].mxu0 %v415
    %v572 = vpop.f32.mrb[0].mxu0
    %v573 = vadd.f32 0.0, %v572
    %v574 = vpop.f32.mrb[0].mxu0
    %575 = vmatprep.mubr.f32.mxu0 %v418
    %576 = vmatmul.mubr.f32.gmra.mrb[0].mxu0 %v417
    %v577 = vpop.f32.mrb[0].mxu0
    %v578 = vadd.f32 0.0, %v577
    %v579 = vpop.f32.mrb[0].mxu0
    %580 = vmatprep.mubr.f32.mxu0 %v420
    %581 = vmatmul.mubr.f32.gmra.mrb[0].mxu0 %v419
    %v582 = vpop.f32.mrb[0].mxu0
    %v583 = vadd.f32 0.0, %v582
    %v584 = vpop.f32.mrb[0].mxu0
    %585 = vmatprep.mubr.f32.mxu0 %v422
    %586 = vmatmul.mubr.f32.gmra.mrb[0].mxu0 %v421
    %v587 = vpop.f32.mrb[0].mxu0
    %v588 = vadd.f32 0.0, %v587
    %v589 = vpop.f32.mrb[0].mxu0
    %590 = vmatprep.mubr.f32.mxu0 %v424
    %591 = vmatmul.mubr.f32.gmra.mrb[0].mxu0 %v423
    %v592 = vpop.f32.mrb[0].mxu0
    %v593 = vadd.f32 0.0, %v592
    %v594 = vpop.f32.mrb[0].mxu0
    %595 = vmatprep.mubr.f32.mxu0 %v426
    %596 = vmatmul.mubr.f32.gmra.mrb[0].mxu0 %v425
    %v597 = vpop.f32.mrb[0].mxu0
    %v598 = vadd.f32 0.0, %v597
    %v599 = vpop.f32.mrb[0].mxu0
    %600 = vmatprep.mubr.f32.mxu0 %v428
    %601 = vmatmul.mubr.f32.gmra.mrb[0].mxu0 %v427
    %v602 = vpop.f32.mrb[0].mxu0
    %v603 = vadd.f32 0.0, %v602
    %v604 = vpop.f32.mrb[0].mxu0
    %605 = vmatprep.mubr.f32.mxu0 %v430
    %606 = vmatmul.mubr.f32.gmra.mrb[0].mxu0 %v429
    %v607 = vpop.f32.mrb[0].mxu0
    %v608 = vadd.f32 0.0, %v607
    %v609 = vpop.f32.mrb[0].mxu0
    %610 = vmatprep.mubr.f32.mxu0 %v432
    %611 = vmatmul.mubr.f32.gmra.mrb[0].mxu0 %v431
    %v612 = vpop.f32.mrb[0].mxu0
    %v613 = vadd.f32 0.0, %v612
    %v614 = vpop.f32.mrb[0].mxu0
    %615 = vmatprep.mubr.f32.mxu0 %v434
    %616 = vmatmul.mubr.f32.gmra.mrb[0].mxu0 %v433
    %v617 = vpop.f32.mrb[0].mxu0
    %v618 = vadd.f32 0.0, %v617
    %v619 = vpop.f32.mrb[0].mxu0
    %620 = vmatprep.mubr.f32.mxu0 %v436
    %621 = vmatmul.mubr.f32.gmra.mrb[0].mxu0 %v435
    %v622 = vpop.f32.mrb[0].mxu0
    %v623 = vadd.f32 0.0, %v622
    %v624 = vpop.f32.mrb[0].mxu0
    %625 = vmatprep.mubr.f32.mxu0 %v438
    %626 = vmatmul.mubr.f32.gmra.mrb[0].mxu0 %v437
    %v627 = vpop.f32.mrb[0].mxu0
    %v628 = vadd.f32 0.0, %v627
    %v629 = vpop.f32.mrb[0].mxu0
    %630 = vmatprep.mubr.f32.mxu0 %v440
    %631 = vmatmul.mubr.f32.gmra.mrb[0].mxu0 %v439
    %v632 = vpop.f32.mrb[0].mxu0
    %v633 = vadd.f32 0.0, %v632
    %v634 = vpop.f32.mrb[0].mxu0
    %635 = vmatprep.mubr.f32.mxu0 %v442
    %636 = vmatmul.mubr.f32.gmra.mrb[0].mxu0 %v441
    %v637 = vpop.f32.mrb[0].mxu0
    %v638 = vadd.f32 0.0, %v637
    %v639 = vpop.f32.mrb[0].mxu0
    %640 = vmatprep.mubr.f32.mxu0 %v444
    %641 = vmatmul.mubr.f32.gmra.mrb[0].mxu0 %v443
    %v642 = vpop.f32.mrb[0].mxu0
    %v643 = vadd.f32 0.0, %v642
    %v644 = vpop.f32.mrb[0].mxu0
    %645 = vmatprep.mubr.f32.mxu0 %v446
    %646 = vmatmul.mubr.f32.gmra.mrb[0].mxu0 %v445
    %v647 = vpop.f32.mrb[0].mxu0
    %v648 = vadd.f32 0.0, %v647
    %v649 = vpop.f32.mrb[0].mxu0
    %650 = vmatprep.mubr.f32.mxu0 %v448
    %651 = vmatmul.mubr.f32.gmra.mrb[0].mxu0 %v447
    %v652 = vpop.f32.mrb[0].mxu0
    %v653 = vadd.f32 0.0, %v652
    %v654 = vpop.f32.mrb[0].mxu0
    %655 = vmatprep.mubr.f32.mxu0 %v450
    %656 = vmatmul.mubr.f32.gmra.mrb[0].mxu0 %v449
    %v657 = vpop.f32.mrb[0].mxu0
    %v658 = vadd.f32 0.0, %v657
    %v659 = vpop.f32.mrb[0].mxu0
    %660 = vmatprep.mubr.f32.mxu0 %v452
    %661 = vmatmul.mubr.f32.gmra.mrb[0].mxu0 %v451
    %v662 = vpop.f32.mrb[0].mxu0
    %v663 = vadd.f32 0.0, %v662
    %v664 = vpop.f32.mrb[0].mxu0
    %665 = vmatprep.mubr.f32.mxu0 %v454
    %666 = vmatmul.mubr.f32.gmra.mrb[0].mxu0 %v453
    %v667 = vpop.f32.mrb[0].mxu0
    %v668 = vadd.f32 0.0, %v667
    %v669 = vpop.f32.mrb[0].mxu0
    %670 = vmatprep.mubr.f32.mxu0 %v456
    %671 = vmatmul.mubr.f32.gmra.mrb[0].mxu0 %v455
    %v672 = vpop.f32.mrb[0].mxu0
    %v673 = vadd.f32 0.0, %v672
    %v674 = vpop.f32.mrb[0].mxu0
    %675 = vmatprep.mubr.f32.mxu0 %v458
    %676 = vmatmul.mubr.f32.gmra.mrb[0].mxu0 %v457
    %v677 = vpop.f32.mrb[0].mxu0
    %v678 = vadd.f32 0.0, %v677
    %v679 = vpop.f32.mrb[0].mxu0
    %680 = vmatprep.mubr.f32.mxu0 %v460
    %681 = vmatmul.mubr.f32.gmra.mrb[0].mxu0 %v459
    %v682 = vpop.f32.mrb[0].mxu0
    %v683 = vadd.f32 0.0, %v682
    %v684 = vpop.f32.mrb[0].mxu0
    %685 = vdwg.mxu0
    %v686 = vmax.f32 %v528, 0.0
    %v687 = vmax.f32 %v533, 0.0
    %v688 = vmax.f32 %v538, 0.0
    %v689 = vmax.f32 %v543, 0.0
    %v690 = vmax.f32 %v548, 0.0
    %v691 = vmax.f32 %v553, 0.0
    %v692 = vmax.f32 %v558, 0.0
    %v693 = vmax.f32 %v563, 0.0
    %v694 = vmax.f32 %v568, 0.0
    %v695 = vmax.f32 %v573, 0.0
    %v696 = vmax.f32 %v578, 0.0
    %v697 = vmax.f32 %v583, 0.0
    %v698 = vmax.f32 %v588, 0.0
    %v699 = vmax.f32 %v593, 0.0
    %v700 = vmax.f32 %v598, 0.0
    %v701 = vmax.f32 %v603, 0.0
    %v702 = vmax.f32 %v608, 0.0
    %v703 = vmax.f32 %v613, 0.0
    %v704 = vmax.f32 %v618, 0.0
    %v705 = vmax.f32 %v623, 0.0
    %v706 = vmax.f32 %v628, 0.0
    %v707 = vmax.f32 %v633, 0.0
    %v708 = vmax.f32 %v638, 0.0
    %v709 = vmax.f32 %v643, 0.0
    %v710 = vmax.f32 %v648, 0.0
    %v711 = vmax.f32 %v653, 0.0
    %v712 = vmax.f32 %v658, 0.0
    %v713 = vmax.f32 %v663, 0.0
    %v714 = vmax.f32 %v668, 0.0
    %v715 = vmax.f32 %v673, 0.0
    %v716 = vmax.f32 %v678, 0.0
    %v717 = vmax.f32 %v683, 0.0
    %v718 = vlaneseq
    %v719 = vand.u32 %v718, 127
    %v720 = vadd.s32 %v719, 128
    %v721 = vlaneseq
    %v722 = vshrl.u32 %v721, 7
    %v723 = vmul.u32 %v722, 128
    %v724 = vsub.s32 %v719, %v723
    %v725 = vsub.s32 %v720, %v723
    %vm726 = vcmp.ge.s32.totalorder %v724, 0
    %vm727 = vcmp.ge.s32.totalorder %v725, 0
    %vm728 = vcmp.lt.s32.totalorder %v724, 64
    %vm729 = vcmp.lt.s32.totalorder %v725, 64
    %vm730 = vmand %vm726, %vm728
    %vm731 = vmand %vm727, %vm729
    %v732 = vsel %vm730, 0.015625, 0.0
    %v733 = vsel %vm731, 0.015625, 0.0
    %734 = vmatprep.subr.mxu0 0.0
    %735 = vmatpush1.msra.mxu0 %v686
    %736 = vmatprep.subr.mxu0 0.0
    %737 = vmatpush1.msra.mxu0 %v687
    %738 = vmatprep.subr.mxu0 0.0
    %739 = vmatpush1.msra.mxu0 %v688
    %740 = vmatprep.subr.mxu0 0.0
    %741 = vmatpush1.msra.mxu0 %v689
    %742 = vmatprep.subr.mxu0 0.0
    %743 = vmatpush1.msra.mxu0 %v690
    %744 = vmatprep.subr.mxu0 0.0
    %745 = vmatpush1.msra.mxu0 %v691
    %746 = vmatprep.subr.mxu0 0.0
    %747 = vmatpush1.msra.mxu0 %v692
    %748 = vmatprep.subr.mxu0 0.0
    %749 = vmatpush1.msra.mxu0 %v693
    %750 = vmatprep.subr.mxu0 0.0
    %751 = vmatpush1.msra.mxu0 %v694
    %752 = vmatprep.subr.mxu0 0.0
    %753 = vmatpush1.msra.mxu0 %v695
    %754 = vmatprep.subr.mxu0 0.0
    %755 = vmatpush1.msra.mxu0 %v696
    %756 = vmatprep.subr.mxu0 0.0
    %757 = vmatpush1.msra.mxu0 %v697
    %758 = vmatprep.subr.mxu0 0.0
    %759 = vmatpush1.msra.mxu0 %v698
    %760 = vmatprep.subr.mxu0 0.0
    %761 = vmatpush1.msra.mxu0 %v699
    %762 = vmatprep.subr.mxu0 0.0
    %763 = vmatpush1.msra.mxu0 %v700
    %764 = vmatprep.subr.mxu0 0.0
    %765 = vmatpush1.msra.mxu0 %v701
    %766 = vmatprep.subr.mxu0 0.0
    %767 = vmatpush1.msra.mxu0 %v702
    %768 = vmatprep.subr.mxu0 0.0
    %769 = vmatpush1.msra.mxu0 %v703
    %770 = vmatprep.subr.mxu0 0.0
    %771 = vmatpush1.msra.mxu0 %v704
    %772 = vmatprep.subr.mxu0 0.0
    %773 = vmatpush1.msra.mxu0 %v705
    %774 = vmatprep.subr.mxu0 0.0
    %775 = vmatpush1.msra.mxu0 %v706
    %776 = vmatprep.subr.mxu0 0.0
    %777 = vmatpush1.msra.mxu0 %v707
    %778 = vmatprep.subr.mxu0 0.0
    %779 = vmatpush1.msra.mxu0 %v708
    %780 = vmatprep.subr.mxu0 0.0
    %781 = vmatpush1.msra.mxu0 %v709
    %782 = vmatprep.subr.mxu0 0.0
    %783 = vmatpush1.msra.mxu0 %v710
    %784 = vmatprep.subr.mxu0 0.0
    %785 = vmatpush1.msra.mxu0 %v711
    %786 = vmatprep.subr.mxu0 0.0
    %787 = vmatpush1.msra.mxu0 %v712
    %788 = vmatprep.subr.mxu0 0.0
    %789 = vmatpush1.msra.mxu0 %v713
    %790 = vmatprep.subr.mxu0 0.0
    %791 = vmatpush1.msra.mxu0 %v714
    %792 = vmatprep.subr.mxu0 0.0
    %793 = vmatpush1.msra.mxu0 %v715
    %794 = vmatprep.subr.mxu0 0.0
    %795 = vmatpush1.msra.mxu0 %v716
    %796 = vmatprep.subr.mxu0 0.0
    %797 = vmatpush1.msra.mxu0 %v717
    %798 = vmatprep.mubr.f32.mxu0 %v733
    %799 = vmatmul.mubr.f32.gmra.mrb[0].mxu0 %v732
    %v800 = vpop.f32.mrb[0].mxu0
    %v801 = vadd.f32 0.0, %v800
    %v802 = vpop.f32.mrb[0].mxu0
    %803 = vdwg.mxu0
    %v804 = vxor.u32 %v801, 2147483648
    %v805 = vmul.f32 %v804, 1.442695
    %v806 = vpow.pop %v805
    %v807 = vadd.f32 %v806, 1.0
    %v808 = vrcp.pop %v807
    %v809 = vmul.f32 1.0, %v808
    %vm810 = vcmask 261120
    %v812 = vsel %vm810, %v809, 0
    %814 = vmatprep.subr.mxu0 0.0
    %815 = vmatpush1.msra.mxu0 %v31
    %816 = vmatprep.subr.mxu0 0.0
    %817 = vmatpush1.msra.mxu0 %v32
    %818 = vmatprep.subr.mxu0 0.0
    %819 = vmatpush1.msra.mxu0 %v33
    %820 = vmatprep.subr.mxu0 0.0
    %821 = vmatpush1.msra.mxu0 %v34
    %822 = vmatprep.subr.mxu0 0.0
    %823 = vmatpush1.msra.mxu0 0.0
    %824 = vmatprep.subr.mxu0 0.0
    %825 = vmatpush1.msra.mxu0 0.0
    %826 = vmatprep.subr.mxu0 0.0
    %827 = vmatpush1.msra.mxu0 0.0
    %828 = vmatprep.subr.mxu0 0.0
    %829 = vmatpush1.msra.mxu0 0.0
    %830 = vmatprep.subr.mxu0 0.0
    %831 = vmatpush1.msra.mxu0 0.0
    %832 = vmatprep.subr.mxu0 0.0
    %833 = vmatpush1.msra.mxu0 0.0
    %834 = vmatprep.subr.mxu0 0.0
    %835 = vmatpush1.msra.mxu0 0.0
    %836 = vmatprep.subr.mxu0 0.0
    %837 = vmatpush1.msra.mxu0 0.0
    %838 = vmatprep.subr.mxu0 0.0
    %839 = vmatpush1.msra.mxu0 0.0
    %840 = vmatprep.subr.mxu0 0.0
    %841 = vmatpush1.msra.mxu0 0.0
    %842 = vmatprep.subr.mxu0 0.0
    %843 = vmatpush1.msra.mxu0 0.0
    %844 = vmatprep.subr.mxu0 0.0
    %845 = vmatpush1.msra.mxu0 0.0
    %846 = vmatprep.subr.mxu0 0.0
    %847 = vmatpush1.msra.mxu0 0.0
    %848 = vmatprep.subr.mxu0 0.0
    %849 = vmatpush1.msra.mxu0 0.0
    %850 = vmatprep.subr.mxu0 0.0
    %851 = vmatpush1.msra.mxu0 0.0
    %852 = vmatprep.subr.mxu0 0.0
    %853 = vmatpush1.msra.mxu0 0.0
    %854 = vmatprep.subr.mxu0 0.0
    %855 = vmatpush1.msra.mxu0 0.0
    %856 = vmatprep.subr.mxu0 0.0
    %857 = vmatpush1.msra.mxu0 0.0
    %858 = vmatprep.subr.mxu0 0.0
    %859 = vmatpush1.msra.mxu0 0.0
    %860 = vmatprep.subr.mxu0 0.0
    %861 = vmatpush1.msra.mxu0 0.0
    %862 = vmatprep.subr.mxu0 0.0
    %863 = vmatpush1.msra.mxu0 0.0
    %864 = vmatprep.subr.mxu0 0.0
    %865 = vmatpush1.msra.mxu0 0.0
    %866 = vmatprep.subr.mxu0 0.0
    %867 = vmatpush1.msra.mxu0 0.0
    %868 = vmatprep.subr.mxu0 0.0
    %869 = vmatpush1.msra.mxu0 0.0
    %870 = vmatprep.subr.mxu0 0.0
    %871 = vmatpush1.msra.mxu0 0.0
    %872 = vmatprep.subr.mxu0 0.0
    %873 = vmatpush1.msra.mxu0 0.0
    %874 = vmatprep.subr.mxu0 0.0
    %875 = vmatpush1.msra.mxu0 0.0
    %876 = vmatprep.subr.mxu0 0.0
    %877 = vmatpush1.msra.mxu0 0.0
    %878 = vmatprep.mubr.f32.mxu0 0.0
    %879 = vmatmul.mubr.f32.gmra.mrb[0].mxu0 %v812
    %v880 = vpop.f32.mrb[0].mxu0
    %v881 = vadd.f32 0.0, %v880
    %v882 = vpop.f32.mrb[0].mxu0
    %883 = vdwg.mxu0
    %v885 = vsel %vm810, %v881, 0
    %v888 = vsel %vm810, %v686, 0
    %v891 = vsel %vm810, %v687, 0
    %v894 = vsel %vm810, %v688, 0
    %v897 = vsel %vm810, %v689, 0
    %v900 = vsel %vm810, %v690, 0
    %v903 = vsel %vm810, %v691, 0
    %v906 = vsel %vm810, %v692, 0
    %v909 = vsel %vm810, %v693, 0
    %v912 = vsel %vm810, %v694, 0
    %v915 = vsel %vm810, %v695, 0
    %v918 = vsel %vm810, %v696, 0
    %v921 = vsel %vm810, %v697, 0
    %v924 = vsel %vm810, %v698, 0
    %v927 = vsel %vm810, %v699, 0
    %v930 = vsel %vm810, %v700, 0
    %v933 = vsel %vm810, %v701, 0
    %v936 = vsel %vm810, %v702, 0
    %v939 = vsel %vm810, %v703, 0
    %v942 = vsel %vm810, %v704, 0
    %v945 = vsel %vm810, %v705, 0
    %v948 = vsel %vm810, %v706, 0
    %v951 = vsel %vm810, %v707, 0
    %v954 = vsel %vm810, %v708, 0
    %v957 = vsel %vm810, %v709, 0
    %v960 = vsel %vm810, %v710, 0
    %v963 = vsel %vm810, %v711, 0
    %v966 = vsel %vm810, %v712, 0
    %v969 = vsel %vm810, %v713, 0
    %v972 = vsel %vm810, %v714, 0
    %v975 = vsel %vm810, %v715, 0
    %v978 = vsel %vm810, %v716, 0
    %v981 = vsel %vm810, %v717, 0
    %983 = vmatprep.subr.mxu0 0.0
    %984 = vmatpush1.xpose.msra.mxu0 %v888
    %985 = vmatprep.subr.mxu0 0.0
    %986 = vmatpush1.xpose.msra.mxu0 %v891
    %987 = vmatprep.subr.mxu0 0.0
    %988 = vmatpush1.xpose.msra.mxu0 %v894
    %989 = vmatprep.subr.mxu0 0.0
    %990 = vmatpush1.xpose.msra.mxu0 %v897
    %991 = vmatprep.subr.mxu0 0.0
    %992 = vmatpush1.xpose.msra.mxu0 %v900
    %993 = vmatprep.subr.mxu0 0.0
    %994 = vmatpush1.xpose.msra.mxu0 %v903
    %995 = vmatprep.subr.mxu0 0.0
    %996 = vmatpush1.xpose.msra.mxu0 %v906
    %997 = vmatprep.subr.mxu0 0.0
    %998 = vmatpush1.xpose.msra.mxu0 %v909
    %999 = vmatprep.subr.mxu0 0.0
    %1000 = vmatpush1.xpose.msra.mxu0 %v912
    %1001 = vmatprep.subr.mxu0 0.0
    %1002 = vmatpush1.xpose.msra.mxu0 %v915
    %1003 = vmatprep.subr.mxu0 0.0
    %1004 = vmatpush1.xpose.msra.mxu0 %v918
    %1005 = vmatprep.subr.mxu0 0.0
    %1006 = vmatpush1.xpose.msra.mxu0 %v921
    %1007 = vmatprep.subr.mxu0 0.0
    %1008 = vmatpush1.xpose.msra.mxu0 %v924
    %1009 = vmatprep.subr.mxu0 0.0
    %1010 = vmatpush1.xpose.msra.mxu0 %v927
    %1011 = vmatprep.subr.mxu0 0.0
    %1012 = vmatpush1.xpose.msra.mxu0 %v930
    %1013 = vmatprep.subr.mxu0 0.0
    %1014 = vmatpush1.xpose.msra.mxu0 %v933
    %1015 = vmatprep.subr.mxu0 0.0
    %1016 = vmatpush1.xpose.msra.mxu0 %v936
    %1017 = vmatprep.subr.mxu0 0.0
    %1018 = vmatpush1.xpose.msra.mxu0 %v939
    %1019 = vmatprep.subr.mxu0 0.0
    %1020 = vmatpush1.xpose.msra.mxu0 %v942
    %1021 = vmatprep.subr.mxu0 0.0
    %1022 = vmatpush1.xpose.msra.mxu0 %v945
    %1023 = vmatprep.subr.mxu0 0.0
    %1024 = vmatpush1.xpose.msra.mxu0 %v948
    %1025 = vmatprep.subr.mxu0 0.0
    %1026 = vmatpush1.xpose.msra.mxu0 %v951
    %1027 = vmatprep.subr.mxu0 0.0
    %1028 = vmatpush1.xpose.msra.mxu0 %v954
    %1029 = vmatprep.subr.mxu0 0.0
    %1030 = vmatpush1.xpose.msra.mxu0 %v957
    %1031 = vmatprep.subr.mxu0 0.0
    %1032 = vmatpush1.xpose.msra.mxu0 %v960
    %1033 = vmatprep.subr.mxu0 0.0
    %1034 = vmatpush1.xpose.msra.mxu0 %v963
    %1035 = vmatprep.subr.mxu0 0.0
    %1036 = vmatpush1.xpose.msra.mxu0 %v966
    %1037 = vmatprep.subr.mxu0 0.0
    %1038 = vmatpush1.xpose.msra.mxu0 %v969
    %1039 = vmatprep.subr.mxu0 0.0
    %1040 = vmatpush1.xpose.msra.mxu0 %v972
    %1041 = vmatprep.subr.mxu0 0.0
    %1042 = vmatpush1.xpose.msra.mxu0 %v975
    %1043 = vmatprep.subr.mxu0 0.0
    %1044 = vmatpush1.xpose.msra.mxu0 %v978
    %1045 = vmatprep.subr.mxu0 0.0
    %1046 = vmatpush1.xpose.msra.mxu0 %v981
    %1047 = vmatprep.mubr.f32.mxu0 0.0
    %1048 = vmatmul.mubr.f32.gmra.mrb[0].mxu0 %v885
    %v1049 = vpop.f32.mrb[0].mxu0
    %v1050 = vadd.f32 0.0, %v1049
    %v1051 = vpop.f32.mrb[0].mxu0
    %v1052 = vadd.f32 0.0, %v1051
    %1053 = vdwg.mxu0
    %vm1054 = vcmask 1040384
    %v1055 = vsel %vm1054, %v1050, %v1052
    %v1056 = vstv %s22
    %v1057 = vadd.f32 %v1055, %v1056
    %1058 = vst [vmem:[%s4] sm:$0x3] %v1057
    %v1059 = vadd.f32 %v686, %v702
    %v1060 = vadd.f32 %v687, %v703
    %v1061 = vadd.f32 %v688, %v704
    %v1062 = vadd.f32 %v689, %v705
    %v1063 = vadd.f32 %v690, %v706
    %v1064 = vadd.f32 %v691, %v707
    %v1065 = vadd.f32 %v692, %v708
    %v1066 = vadd.f32 %v693, %v709
    %v1067 = vadd.f32 %v694, %v710
    %v1068 = vadd.f32 %v695, %v711
    %v1069 = vadd.f32 %v696, %v712
    %v1070 = vadd.f32 %v697, %v713
    %v1071 = vadd.f32 %v698, %v714
    %v1072 = vadd.f32 %v699, %v715
    %v1073 = vadd.f32 %v700, %v716
    %v1074 = vadd.f32 %v701, %v717
    %v1075 = vmul.f32 %v1059, 0.5
    %v1076 = vmul.f32 %v1060, 0.5
    %v1077 = vmul.f32 %v1061, 0.5
    %v1078 = vmul.f32 %v1062, 0.5
    %v1079 = vmul.f32 %v1063, 0.5
    %v1080 = vmul.f32 %v1064, 0.5
    %v1081 = vmul.f32 %v1065, 0.5
    %v1082 = vmul.f32 %v1066, 0.5
    %v1083 = vmul.f32 %v1067, 0.5
    %v1084 = vmul.f32 %v1068, 0.5
    %v1085 = vmul.f32 %v1069, 0.5
    %v1086 = vmul.f32 %v1070, 0.5
    %v1087 = vmul.f32 %v1071, 0.5
    %v1088 = vmul.f32 %v1072, 0.5
    %v1089 = vmul.f32 %v1073, 0.5
    %v1090 = vmul.f32 %v1074, 0.5
    %1091 = vst.msk [vmem:[%s5] sm:$0xff] %vm810, %v1075
    %1092 = vst.msk [vmem:[%s5 + $0x8] sm:$0xff] %vm810, %v1076
    %1093 = vst.msk [vmem:[%s5 + $0x10] sm:$0xff] %vm810, %v1077
    %1094 = vst.msk [vmem:[%s5 + $0x18] sm:$0xff] %vm810, %v1078
    %1095 = vst.msk [vmem:[%s5 + $0x20] sm:$0xff] %vm810, %v1079
    %1096 = vst.msk [vmem:[%s5 + $0x28] sm:$0xff] %vm810, %v1080
    %1097 = vst.msk [vmem:[%s5 + $0x30] sm:$0xff] %vm810, %v1081
    %1098 = vst.msk [vmem:[%s5 + $0x38] sm:$0xff] %vm810, %v1082
    %v1099 = vsub.f32 %v35, %v1075
    %v1100 = vsub.f32 %v36, %v1076
    %v1101 = vsub.f32 %v37, %v1077
    %v1102 = vsub.f32 %v38, %v1078
    %v1103 = vsub.f32 %v39, %v1079
    %v1104 = vsub.f32 %v40, %v1080
    %v1105 = vsub.f32 %v41, %v1081
    %v1106 = vsub.f32 %v42, %v1082
    %v1107 = vsub.f32 %v35, %v1083
    %v1108 = vsub.f32 %v36, %v1084
    %v1109 = vsub.f32 %v37, %v1085
    %v1110 = vsub.f32 %v38, %v1086
    %v1111 = vsub.f32 %v39, %v1087
    %v1112 = vsub.f32 %v40, %v1088
    %v1113 = vsub.f32 %v41, %v1089
    %v1114 = vsub.f32 %v42, %v1090
    %v1115 = vmul.f32 %v1099, %v1099
    %v1116 = vmul.f32 %v1100, %v1100
    %v1117 = vmul.f32 %v1101, %v1101
    %v1118 = vmul.f32 %v1102, %v1102
    %v1119 = vmul.f32 %v1103, %v1103
    %v1120 = vmul.f32 %v1104, %v1104
    %v1121 = vmul.f32 %v1105, %v1105
    %v1122 = vmul.f32 %v1106, %v1106
    %v1123 = vmul.f32 %v1107, %v1107
    %v1124 = vmul.f32 %v1108, %v1108
    %v1125 = vmul.f32 %v1109, %v1109
    %v1126 = vmul.f32 %v1110, %v1110
    %v1127 = vmul.f32 %v1111, %v1111
    %v1128 = vmul.f32 %v1112, %v1112
    %v1129 = vmul.f32 %v1113, %v1113
    %v1130 = vmul.f32 %v1114, %v1114
    %v1131 = vsub.f32 %v1115, %v1123
    %v1132 = vsub.f32 %v1116, %v1124
    %v1133 = vsub.f32 %v1117, %v1125
    %v1134 = vsub.f32 %v1118, %v1126
    %v1135 = vsub.f32 %v1119, %v1127
    %v1136 = vsub.f32 %v1120, %v1128
    %v1137 = vsub.f32 %v1121, %v1129
    %v1138 = vsub.f32 %v1122, %v1130
    %v1139 = vsel %vm810, %v1131, 0.0
    %v1140 = vsel %vm810, %v1132, 0.0
    %v1141 = vadd.f32 %v1139, %v1140
    %v1142 = vsel %vm810, %v1133, 0.0
    %v1143 = vadd.f32 %v1141, %v1142
    %v1144 = vsel %vm810, %v1134, 0.0
    %v1145 = vadd.f32 %v1143, %v1144
    %v1146 = vsel %vm810, %v1135, 0.0
    %v1147 = vadd.f32 %v1145, %v1146
    %v1148 = vsel %vm810, %v1136, 0.0
    %v1149 = vadd.f32 %v1147, %v1148
    %v1150 = vsel %vm810, %v1137, 0.0
    %v1151 = vadd.f32 %v1149, %v1150
    %v1152 = vsel %vm810, %v1138, 0.0
    %v1153 = vadd.f32 %v1151, %v1152
    %1154 = vadd.xlane.f32.xlu0 %v1153
    %v1155 = vpop.xlane.xlu0 %1154
    %v1156 = vrot.slane %v1155, 4
    %v1157 = vadd.f32 %v1155, %v1156
    %v1158 = vrot.slane %v1157, 2
    %v1159 = vadd.f32 %v1157, %v1158
    %v1160 = vrot.slane %v1159, 1
    %v1161 = vadd.f32 %v1159, %v1160
    %s1162 = vtos %v1161
    %v1163 = vstv %s1162
    %vm1164 = vcmask 0
    %1165 = vst.msk [vmem:[#allocation3] sm:$0x1] %vm1164, %v1163
    // Predicated region
    $region18: #{dmgi_forward.1} parent=1 // pred_check
      _
    $region19: #{dmgi_forward.1} parent=1 // pred_check_branch
      %1167 = sbr.rel (0) target = $region21
    $region20: #{dmgi_forward.1} parent=1 // pred_region
      _
    $region21: #{dmgi_forward.1} parent=1 // pred_fallthru
      _
    // Predicated region
    $region22: #{dmgi_forward.1} parent=1 // pred_check
      _
    $region23: #{dmgi_forward.1} parent=1 // pred_check_branch
      %1169 = sbr.rel (0) target = $region25
    $region24: #{dmgi_forward.1} parent=1 // pred_region
      _
    $region25: #{dmgi_forward.1} parent=1 // pred_fallthru
      _
    // Predicated region
    $region26: #{dmgi_forward.1} parent=1 // pred_check
      _
    $region27: #{dmgi_forward.1} parent=1 // pred_check_branch
      %1171 = sbr.rel (0) target = $region29
    $region28: #{dmgi_forward.1} parent=1 // pred_region
      %s1173 = ssub.s32 16, 16
      %1174 = vsyncadd [#allocation4], %s1173
      %s1176 = sshll.u32 [#allocation3], 4
      %s1177 = int_to_ptr.vmem [resolvable:$true] %s1176
      %1179 = dma.vmem_to_hbm [thread:$0]  %s1177, 16, %s6, [#allocation4]
    $region29: #{dmgi_forward.1} parent=1 // pred_fallthru
      _
    // Predicated region
    $region30: #{dmgi_forward.1} parent=1 // pred_check
      _
    $region31: #{dmgi_forward.1} parent=1 // pred_check_branch
      %1181 = sbr.rel (0) target = $region33
    $region32: #{dmgi_forward.1} parent=1 // pred_region
      _
    $region33: #{dmgi_forward.1} parent=1 // pred_fallthru
      _
    // Predicated region
    $region34: #{dmgi_forward.1} parent=1 // pred_check
      _
    $region35: #{dmgi_forward.1} parent=1 // pred_check_branch
      %1183 = sbr.rel (0) target = $region37
    $region36: #{dmgi_forward.1} parent=1 // pred_region
      _
    $region37: #{dmgi_forward.1} parent=1 // pred_fallthru
      _
    // Predicated region
    $region38: #{dmgi_forward.1} parent=1 // pred_check
      _
    $region39: #{dmgi_forward.1} parent=1 // pred_check_branch
      %1185 = sbr.rel (0) target = $region41
    $region40: #{dmgi_forward.1} parent=1 // pred_region
      %1186 = dma.done [#allocation4], 16
    $region41: #{dmgi_forward.1} parent=1 // pred_fallthru
      _
    %1187 = vsyncpa [#allocation4], 1

</llo_original>
